<compile_context>
chip_gen: v7x
topology: tpu7x:2x2x1
jax: 0.10.0
libtpu: 0.0.40
codegen_flags: <defaults>
</compile_context>

<pallas_src>
from functools import partial

import numpy as np
import jax
import jax.numpy as jnp
from jax.experimental import pallas as pl
from jax.experimental.pallas import tpu as pltpu

# ---- small, module-consistent synthetic dims -------------------------------
HIDDEN = 32        # CONTEXT_HIDDEN_DIM
POOL = 64          # CONTEXT_POOLING_DIM
MLP_HEAD = 48      # ROI_BOX_HEAD.MLP_HEAD_DIM  (!= POOL => union_single_not_match)
CLIP_DIM = 512     # down_dim output dim (fixed to 512 by the module)
NUM_OBJ_CLS = 11
NUM_REL_CLS = 13
IN_CHANNELS = 64
A1 = 0.5           # config.MODEL.ROI_RELATION_HEAD.HP.A1
A2 = 0.5           # config.MODEL.ROI_RELATION_HEAD.HP.A2  (eval-mode branch)

PACK = 128                       # packed x lanes: [hctx|tctx|union|1|0-pad]
ONE_LANE = 2 * HIDDEN + MLP_HEAD  # 112 — constant-1 lane used for bias folding
REL_PAD = 128                    # lane-dense logits width; real logits [:, :NUM_REL_CLS]
FB_PAD = 128                     # frequency-bias table rows padded to one tile

assert ONE_LANE + 1 <= PACK
assert NUM_REL_CLS <= REL_PAD and NUM_OBJ_CLS * NUM_OBJ_CLS <= FB_PAD
assert 2 * POOL == 128 and PACK == 128 and REL_PAD == 128  # single-tile weights / roll pairing


def _choose_tile_rows(r_total):
    # Big tiles amortize the ~0.35us per-grid-step overhead; keep >=2 grid
    # steps when there is enough work so the "parallel" row axis can be split
    # across v7x's two TensorCores (v5e/v6e are single-TC, no downside).
    for tr in (512, 256, 128):
        if r_total >= 2 * tr:
            return tr
    return 128


# ---------------------------------------------------------------------------
# Pallas kernel: per TR-row tile, 4 (TR,128)x(128,128) bf16 MXU matmuls
# ---------------------------------------------------------------------------
def _hp_rel_kernel(x_ref, idx_ref, w1_ref, wbig_ref, g_ref, c_ref, ftab_ref, out_ref):
    f32, bf16 = jnp.float32, jnp.bfloat16
    tr = x_ref.shape[0]

    # [post_cat-fold | up_dim] in ONE N=128 MXU pass; b_cat/b_up ride x's ones lane.
    y = jnp.dot(x_ref[...], w1_ref[...], preferred_element_type=f32)      # (TR,128)
    # prod_rep * up_dim(union): roll pairs lane l with lane l^64 (XLU slot, ~free).
    pf = y * pltpu.roll(y, shift=POOL, axis=1)                            # (TR,128)=[p|p]
    pf16 = pf.astype(bf16)

    # down_dim folded through the CLIP text head:
    #   rel_unnorm = p @ (w_dd @ T_comb) + b_dd @ T_comb
    rel = jnp.dot(pf16, wbig_ref[...], preferred_element_type=f32) + c_ref[0:1, :]

    # ||img||^2 via the Gram form — no (TR,512) intermediate is ever built:
    #   p (w_dd w_dd^T) p^T + 2 p.(w_dd b_dd^T) + ||b_dd||^2
    q = jnp.dot(pf16, g_ref[...], preferred_element_type=f32)
    sumsq = jnp.sum((q + c_ref[1:2, :]) * pf + c_ref[2:3, :], axis=1, keepdims=True)
    inv = jax.lax.rsqrt(jnp.maximum(sumsq, 1e-24))        # EUP; == 1/max(||img||,1e-12)

    # frequency bias: one-hot(pair_pred) @ resident table (exact bf16 row values)
    lane = jax.lax.broadcasted_iota(jnp.int32, (tr, FB_PAD), 1)
    oh = (idx_ref[...] == lane).astype(bf16)                              # (TR,128)
    freq = jnp.dot(oh, ftab_ref[...], preferred_element_type=f32)

    out_ref[...] = (inv * rel + freq).astype(out_ref.dtype)               # bf16, lane-dense


def hp_rel_dists_pallas(x, idx, fd, *, tr):
    r_pad = x.shape[0]
    assert r_pad % tr == 0
    grid = (r_pad // tr,)

    def rows(c):
        return pl.BlockSpec((tr, c), lambda i: (i, 0))

    def full(shape):
        return pl.BlockSpec(shape, lambda i, _n=len(shape): (0,) * _n)

    in_specs = [
        rows(PACK),                     # packed per-row features (bf16)
        rows(1),                        # pair_pred flat index (int32, 4 B/row)
        full((PACK, 2 * POOL)),         # W1: [post_cat fold | up_dim], biases in ONE_LANE row
        full((2 * POOL, REL_PAD)),      # w_dd @ T_comb (rows 64.. zero)
        full((2 * POOL, 2 * POOL)),     # Gram = w_dd w_dd^T (padded)
        full((3, REL_PAD)),             # consts: [b_dd@T_comb ; 2 w_dd b_dd^T ; ||b_dd||^2/128]
        full((FB_PAD, REL_PAD)),        # frequency-bias table, resident
    ]
    out_spec = rows(REL_PAD)

    return pl.pallas_call(
        _hp_rel_kernel,
        out_shape=jax.ShapeDtypeStruct((r_pad, REL_PAD), jnp.bfloat16),
        grid=grid,
        in_specs=in_specs,
        out_specs=out_spec,
        compiler_params=pltpu.CompilerParams(dimension_semantics=("parallel",)),
    )(x, idx, fd["w1"], fd["wbig"], fd["gram"], fd["consts"], fd["ftab"])


# ---------------------------------------------------------------------------
# Wrapper-side folding (done once; hoists everything row-independent)
# ---------------------------------------------------------------------------
def fold_hp_params(params, scalars, text_feats, freq_table):
    f32, bf16 = jnp.float32, jnp.bfloat16
    hdot = lambda a, b: jnp.dot(a, b, precision=jax.lax.Precision.HIGHEST)
    ls, ls_img, a1, a2 = jnp.exp(scalars[0]), jnp.exp(scalars[1]), scalars[2], scalars[3]

    # post_emb folded into post_cat (both pure Linear in the original forward)
    w_h = hdot(params["w_pe_head"], params["w_pc_head"])                  # (H, POOL)
    w_t = hdot(params["w_pe_tail"], params["w_pc_tail"])                  # (H, POOL)
    b_cat = (hdot(params["b_pe_head"], params["w_pc_head"])
             + hdot(params["b_pe_tail"], params["w_pc_tail"]) + params["b_pc"])  # (1, POOL)

    # W1: packed-row operand -> [cat | up] with biases on the constant-1 lane
    w1 = jnp.zeros((PACK, 2 * POOL), f32)
    w1 = w1.at[0:HIDDEN, :POOL].set(w_h)
    w1 = w1.at[HIDDEN:2 * HIDDEN, :POOL].set(w_t)
    w1 = w1.at[2 * HIDDEN:ONE_LANE, POOL:].set(params["w_up"])
    w1 = w1.at[ONE_LANE, :POOL].set(b_cat[0])
    w1 = w1.at[ONE_LANE, POOL:].set(params["b_up"][0])

    # normalize / scale / combine the three text matrices into one (512, REL_PAD):
    #   rel = ls*img@n(t0).T ; rel[:,1:] += ls_img*(a1*img@n(t1).T + a2*img@n(t2).T)[:,1:]
    def ncols(t):  # (NREL, CLIP) -> column-normalized (CLIP, NREL)
        tt = t.T
        return tt / jnp.maximum(jnp.sqrt(jnp.sum(tt * tt, axis=0, keepdims=True)), 1e-12)

    t0, t1, t2 = (ncols(t) for t in text_feats)
    keep = (jnp.arange(NUM_REL_CLS)[None, :] >= 1).astype(f32)            # zero class-0 column
    t_comb = ls * t0 + keep * ls_img * (a1 * t1 + a2 * t2)
    t_pad = jnp.zeros((CLIP_DIM, REL_PAD), f32).at[:, :NUM_REL_CLS].set(t_comb)

    # fold down_dim through the CLIP head; the per-row 1/||img|| scale is
    # recovered in-kernel from the Gram form, so this is algebraically exact.
    w_dd, b_dd = params["w_dd"], params["b_dd"]                           # (POOL,CLIP),(1,CLIP)
    wbig = jnp.zeros((2 * POOL, REL_PAD), f32).at[:POOL, :].set(hdot(w_dd, t_pad))
    gram = jnp.zeros((2 * POOL, 2 * POOL), f32).at[:POOL, :POOL].set(hdot(w_dd, w_dd.T))

    c_row = hdot(b_dd, t_pad)[0]                                          # (REL_PAD,)
    twov = jnp.zeros((REL_PAD,), f32).at[:POOL].set(2.0 * hdot(w_dd, b_dd[0]))
    bn_spread = jnp.full((REL_PAD,), jnp.sum(b_dd * b_dd) / (2 * POOL), f32)
    consts = jnp.stack([c_row, twov, bn_spread], axis=0)                  # (3, REL_PAD)

    # frequency-bias table, padded to one resident (128,128) tile (output is bf16)
    ftab = jnp.zeros((FB_PAD, REL_PAD), f32)
    ftab = ftab.at[:NUM_OBJ_CLS * NUM_OBJ_CLS, :NUM_REL_CLS].set(freq_table)

    return {
        "w1": w1.astype(bf16),
        "wbig": wbig.astype(bf16),
        "gram": gram.astype(bf16),
        "consts": consts.astype(f32),
        "ftab": ftab.astype(bf16),
    }


# ---------------------------------------------------------------------------
# Packing + jitted relation path (fused with the pallas_call)
# ---------------------------------------------------------------------------
def _pack_rows(edge_ctx, union, head_idx, tail_idx, pair_flat, r_pad):
    r_total = head_idx.shape[0]
    hctx = jnp.take(edge_ctx, head_idx, axis=0)
    tctx = jnp.take(edge_ctx, tail_idx, axis=0)
    ones = jnp.ones((r_total, 1), edge_ctx.dtype)                         # bias lane
    x = jnp.concatenate([hctx, tctx, union, ones], axis=1)                # (r, 113)
    x = jnp.pad(x, ((0, r_pad - r_total), (0, PACK - x.shape[1]))).astype(jnp.bfloat16)
    idx = jnp.pad(pair_flat.astype(jnp.int32), (0, r_pad - r_total))[:, None]
    return x, idx


@partial(jax.jit, static_argnames=("r_pad", "tr"))
def _rel_dists_jit(fd, edge_ctx, union, head_idx, tail_idx, pair_flat, *, r_pad, tr):
    r_total = head_idx.shape[0]
    x, idx = _pack_rows(edge_ctx, union, head_idx, tail_idx, pair_flat, r_pad)
    rel = hp_rel_dists_pallas(x, idx, fd, tr=tr)
    return rel[:r_total, :NUM_REL_CLS].astype(jnp.float32)


# ---------------------------------------------------------------------------
# References
# ---------------------------------------------------------------------------
def _hp_rel_dists_folded_ref(x, idx, fd):
    """Same folded/bf16 math as the kernel, in plain JAX (tight check)."""
    f32, bf16 = jnp.float32, jnp.bfloat16
    c = fd["consts"]
    y = jnp.dot(x, fd["w1"], preferred_element_type=f32)
    pf = y * jnp.roll(y, POOL, axis=1)          # 64-shift pairing == kernel's roll
    pf16 = pf.astype(bf16)
    rel = jnp.dot(pf16, fd["wbig"], preferred_element_type=f32) + c[0:1, :]
    q = jnp.dot(pf16, fd["gram"], preferred_element_type=f32)
    sumsq = jnp.sum((q + c[1:2, :]) * pf + c[2:3, :], axis=1, keepdims=True)
    inv = jax.lax.rsqrt(jnp.maximum(sumsq, 1e-24))
    freq = fd["ftab"][idx[:, 0]].astype(f32)    # exactly the one-hot bf16 matmul values
    return (inv * rel + freq).astype(bf16)


def _hp_rel_dists_f32_ref(params, scalars, text_feats, freq_table,
                          hctx, tctx, union, pair_flat):
    """Original-op-order float32 reference of the PyTorch hot path (loose check)."""
    dot = lambda a, b: jnp.dot(a, b, precision=jax.lax.Precision.HIGHEST)
    ls, ls_img, a1, a2 = jnp.exp(scalars[0]), jnp.exp(scalars[1]), scalars[2], scalars[3]
    head = dot(hctx, params["w_pe_head"]) + params["b_pe_head"]
    tail = dot(tctx, params["w_pe_tail"]) + params["b_pe_tail"]
    prod = dot(head, params["w_pc_head"]) + dot(tail, params["w_pc_tail"]) + params["b_pc"]
    prod = prod * (dot(union, params["w_up"]) + params["b_up"])
    img = dot(prod, params["w_dd"]) + params["b_dd"]
    nrm = lambda v: v / jnp.maximum(jnp.sqrt(jnp.sum(v * v, axis=-1, keepdims=True)), 1e-12)
    img = nrm(img)
    t0, t1, t2 = (nrm(t) for t in text_feats)
    rel = ls * dot(img, t0.T)
    hard = ls_img * dot(img, t1.T)
    harder = ls_img * dot(img, t2.T)
    rel = rel.at[:, 1:].add(a1 * hard[:, 1:] + a2 * harder[:, 1:])
    return rel + freq_table[pair_flat]


# ---------------------------------------------------------------------------
# HP_Predictor.forward glue
# ---------------------------------------------------------------------------
def hp_predictor_forward(params, scalars, text_feats, folded, freq_table,
                         roi_features, union_features, rel_pair_idxs, num_objs,
                         rel_impl="pallas"):
    # TODO(synk): stand-in for LSTMContext -> (obj_dists, obj_preds, edge_ctx)
    edge_ctx = jnp.tanh(roi_features @ params["w_ctx"] + params["b_ctx"])
    obj_dists = roi_features @ params["w_obj"] + params["b_obj"]
    obj_preds = jnp.argmax(obj_dists, axis=-1)

    # gather per-relation rows (post_emb/post_cat are linear, so gathering the
    # edge_ctx rows first is mathematically identical to the PyTorch order)
    offsets = np.concatenate([[0], np.cumsum(num_objs)[:-1]]).astype(np.int32)
    head_idx = jnp.concatenate([p[:, 0] + int(o) for p, o in zip(rel_pair_idxs, offsets)])
    tail_idx = jnp.concatenate([p[:, 1] + int(o) for p, o in zip(rel_pair_idxs, offsets)])
    # freq_bias.index_with_labels(pair_pred): flat (head_cls * num_obj_cls + tail_cls)
    pair_flat = obj_preds[head_idx] * NUM_OBJ_CLS + obj_preds[tail_idx]

    num_rels = [int(p.shape[0]) for p in rel_pair_idxs]
    r_total = sum(num_rels)

    if rel_impl == "f32_ref":
        hctx, tctx = edge_ctx[head_idx], edge_ctx[tail_idx]
        rel = _hp_rel_dists_f32_ref(params, scalars, text_feats, freq_table,
                                    hctx, tctx, union_features, pair_flat)
    else:
        tr = _choose_tile_rows(r_total)
        r_pad = pl.cdiv(r_total, tr) * tr
        if rel_impl == "pallas":
            rel = _rel_dists_jit(folded, edge_ctx, union_features,
                                 head_idx, tail_idx, pair_flat, r_pad=r_pad, tr=tr)
        else:  # "folded_ref": exact kernel math in plain JAX
            x, idx = _pack_rows(edge_ctx, union_features, head_idx, tail_idx,
                                pair_flat, r_pad)
            rel = _hp_rel_dists_folded_ref(x, idx, folded)
            rel = rel[:r_total, :NUM_REL_CLS].astype(jnp.float32)

    obj_splits = jnp.split(obj_dists, np.cumsum(num_objs)[:-1])
    rel_splits = jnp.split(rel, np.cumsum(num_rels)[:-1])
    return obj_splits, rel_splits, {}


# ---------------------------------------------------------------------------
if __name__ == "__main__":
    key = jax.random.PRNGKey(0)
    keys = iter(jax.random.split(key, 32))
    nrm = lambda shape, scale=0.02: (scale * jax.random.normal(next(keys), shape)).astype(jnp.float32)
    xavier = lambda fi, fo: float(np.sqrt(2.0 / (fi + fo)))

    # biases are small but nonzero so the in-kernel bias folds are exercised
    params = {
        "w_ctx": nrm((IN_CHANNELS, HIDDEN), 0.05),
        "b_ctx": nrm((1, HIDDEN)),
        "w_obj": nrm((IN_CHANNELS, NUM_OBJ_CLS), 0.05),
        "b_obj": nrm((1, NUM_OBJ_CLS)),
        # post_emb: normal init, scale 10/sqrt(hidden); split head/tail halves
        "w_pe_head": nrm((HIDDEN, HIDDEN), 10.0 / np.sqrt(HIDDEN)),
        "b_pe_head": nrm((1, HIDDEN), 0.05),
        "w_pe_tail": nrm((HIDDEN, HIDDEN), 10.0 / np.sqrt(HIDDEN)),
        "b_pe_tail": nrm((1, HIDDEN), 0.05),
        # post_cat (xavier), weight split into head/tail blocks of the 2H input
        "w_pc_head": nrm((HIDDEN, POOL), xavier(2 * HIDDEN, POOL)),
        "w_pc_tail": nrm((HIDDEN, POOL), xavier(2 * HIDDEN, POOL)),
        "b_pc": nrm((1, POOL), 0.05),
        # up_dim (xavier) — union_single_not_match since MLP_HEAD != POOL
        "w_up": nrm((MLP_HEAD, POOL), xavier(MLP_HEAD, POOL)),
        "b_up": nrm((1, POOL), 0.05),
        # down_dim (xavier)
        "w_dd": nrm((POOL, CLIP_DIM), xavier(POOL, CLIP_DIM)),
        "b_dd": nrm((1, CLIP_DIM), 0.02),
    }

    # TODO(synk): deterministic stand-ins for text_encoder(prompt_learner_{,kl,harder}())
    text_feats = (nrm((NUM_REL_CLS, CLIP_DIM), 1.0),
                  nrm((NUM_REL_CLS, CLIP_DIM), 1.0),
                  nrm((NUM_REL_CLS, CLIP_DIM), 1.0))
    # FrequencyBias embedding table (num_obj_cls^2, num_rel_cls)
    freq_table = nrm((NUM_OBJ_CLS * NUM_OBJ_CLS, NUM_REL_CLS), 1.0)

    # learnable scalars: logit_scale, logit_scale_image, and a1/a2 constants
    ls0 = float(np.log(1.0 / 0.07))
    scalars = jnp.array([ls0, ls0, A1, A2], jnp.float32)

    # everything row-independent is folded / pre-combined once, outside the kernel
    folded = fold_hp_params(params, scalars, text_feats, freq_table)

    def make_case(k1, k2, k3, num_objs, num_rels):
        roi = jax.random.normal(k1, (sum(num_objs), IN_CHANNELS), jnp.float32)
        union = jax.random.normal(k2, (sum(num_rels), MLP_HEAD), jnp.float32)
        pk = jax.random.split(k3, len(num_rels))
        pairs = [jax.random.randint(pk[i], (num_rels[i], 2), 0, num_objs[i], dtype=jnp.int32)
                 for i in range(len(num_rels))]
        return roi, union, pairs

    cases = [
        ([5, 4], [6, 5]),          # tiny demo: TR=128, grid=(1,)
        ([24, 20], [640, 500]),    # larger: TR=512, grid=(3,) -> exercises big-tile + megacore split
    ]

    for num_objs, num_rels in cases:
        roi, union, pairs = make_case(next(keys), next(keys), next(keys), num_objs, num_rels)

        run = lambda impl: hp_predictor_forward(
            params, scalars, text_feats, folded, freq_table,
            roi, union, pairs, num_objs, rel_impl=impl)

        obj_dists, rel_pal, add_losses = run("pallas")
        _, rel_fold, _ = run("folded_ref")
        _, rel_f32, _ = run("f32_ref")

        rel_pal = [jax.block_until_ready(r) for r in rel_pal]
        for r, rb, rf, nr in zip(rel_pal, rel_fold, rel_f32, num_rels):
            assert r.shape == (nr, NUM_REL_CLS), r.shape
            # tight: identical folded/bf16 math in plain JAX — checks Pallas plumbing
            assert jnp.allclose(r, rb, rtol=5e-3, atol=3e-2), "mismatch vs folded bf16 JAX reference"
            # loose: original-op-order f32 math — checks folding semantics (bf16 rounding slack)
            assert jnp.allclose(r, rf, rtol=5e-2, atol=3.5e-1), "mismatch vs f32 reference"
        for o, no in zip(obj_dists, num_objs):
            assert o.shape == (no, NUM_OBJ_CLS), o.shape

    print("KERNEL_OK")
</pallas_src>

<mosaic_0001>
module attributes {stable_mosaic.version = 11 : i64} {
  func.func @_hp_rel_kernel(%arg0: i32, %arg1: memref<128x128xbf16, #tpu.memory_space<vmem>>, %arg2: memref<128x1xi32, #tpu.memory_space<vmem>>, %arg3: memref<128x128xbf16, #tpu.memory_space<vmem>>, %arg4: memref<128x128xbf16, #tpu.memory_space<vmem>>, %arg5: memref<128x128xbf16, #tpu.memory_space<vmem>>, %arg6: memref<3x128xf32, #tpu.memory_space<vmem>>, %arg7: memref<128x128xbf16, #tpu.memory_space<vmem>>, %arg8: memref<128x128xbf16, #tpu.memory_space<vmem>>) attributes {dimension_semantics = [#tpu.dimension_semantics<parallel>], iteration_bounds = array<i64: 1>, scalar_prefetch = 0 : i64, scratch_operands = 0 : i64, tpu.core_type = #tpu.core_type<tc>, window_params = [{transform_indices = @transform_0, window_bounds = array<i64: 128, 128>}, {transform_indices = @transform_1, window_bounds = array<i64: 128, 1>}, {pipeline_mode = #tpu.pipeline_mode<synchronous>, transform_indices = @transform_2, window_bounds = array<i64: 128, 128>}, {pipeline_mode = #tpu.pipeline_mode<synchronous>, transform_indices = @transform_3, window_bounds = array<i64: 128, 128>}, {pipeline_mode = #tpu.pipeline_mode<synchronous>, transform_indices = @transform_4, window_bounds = array<i64: 128, 128>}, {pipeline_mode = #tpu.pipeline_mode<synchronous>, transform_indices = @transform_5, window_bounds = array<i64: 3, 128>}, {pipeline_mode = #tpu.pipeline_mode<synchronous>, transform_indices = @transform_6, window_bounds = array<i64: 128, 128>}, {transform_indices = @transform_7, window_bounds = array<i64: 128, 128>}]} {
    %c0 = arith.constant 0 : index
    %c0_0 = arith.constant 0 : index
    %0 = vector.load %arg1[%c0, %c0_0] : memref<128x128xbf16, #tpu.memory_space<vmem>>, vector<128x128xbf16>
    %c0_1 = arith.constant 0 : index
    %c0_2 = arith.constant 0 : index
    %1 = vector.load %arg3[%c0_1, %c0_2] : memref<128x128xbf16, #tpu.memory_space<vmem>>, vector<128x128xbf16>
    %cst = arith.constant dense<0.000000e+00> : vector<128x128xf32>
    %2 = tpu.matmul %0, %1, %cst {dimension_numbers = #tpu.dot_dimension_numbers<[1], [0], [0], [1], [0, 0, 1, 1], [], []>} : vector<128x128xbf16>, vector<128x128xbf16>, vector<128x128xf32> -> vector<128x128xf32>
    %c64_i32 = arith.constant 64 : i32
    %3 = tpu.dynamic_rotate %2 by %c64_i32 dim 1 : vector<128x128xf32>, i32 -> vector<128x128xf32>
    %4 = arith.mulf %2, %3 : vector<128x128xf32>
    %5 = arith.truncf %4 : vector<128x128xf32> to vector<128x128xbf16>
    %c0_3 = arith.constant 0 : index
    %c0_4 = arith.constant 0 : index
    %6 = vector.load %arg4[%c0_3, %c0_4] : memref<128x128xbf16, #tpu.memory_space<vmem>>, vector<128x128xbf16>
    %cst_5 = arith.constant dense<0.000000e+00> : vector<128x128xf32>
    %7 = tpu.matmul %5, %6, %cst_5 {dimension_numbers = #tpu.dot_dimension_numbers<[1], [0], [0], [1], [0, 0, 1, 1], [], []>} : vector<128x128xbf16>, vector<128x128xbf16>, vector<128x128xf32> -> vector<128x128xf32>
    %c0_6 = arith.constant 0 : index
    %c0_7 = arith.constant 0 : index
    %8 = vector.load %arg6[%c0_6, %c0_7] : memref<3x128xf32, #tpu.memory_space<vmem>>, vector<1x128xf32>
    %9 = vector.broadcast %8 : vector<1x128xf32> to vector<128x128xf32>
    %10 = arith.addf %7, %9 : vector<128x128xf32>
    %c0_8 = arith.constant 0 : index
    %c0_9 = arith.constant 0 : index
    %11 = vector.load %arg5[%c0_8, %c0_9] : memref<128x128xbf16, #tpu.memory_space<vmem>>, vector<128x128xbf16>
    %cst_10 = arith.constant dense<0.000000e+00> : vector<128x128xf32>
    %12 = tpu.matmul %5, %11, %cst_10 {dimension_numbers = #tpu.dot_dimension_numbers<[1], [0], [0], [1], [0, 0, 1, 1], [], []>} : vector<128x128xbf16>, vector<128x128xbf16>, vector<128x128xf32> -> vector<128x128xf32>
    %c1 = arith.constant 1 : index
    %c0_11 = arith.constant 0 : index
    %13 = vector.load %arg6[%c1, %c0_11] : memref<3x128xf32, #tpu.memory_space<vmem>>, vector<1x128xf32>
    %14 = vector.broadcast %13 : vector<1x128xf32> to vector<128x128xf32>
    %15 = arith.addf %12, %14 : vector<128x128xf32>
    %16 = arith.mulf %15, %4 : vector<128x128xf32>
    %c2 = arith.constant 2 : index
    %c0_12 = arith.constant 0 : index
    %17 = vector.load %arg6[%c2, %c0_12] : memref<3x128xf32, #tpu.memory_space<vmem>>, vector<1x128xf32>
    %18 = vector.broadcast %17 : vector<1x128xf32> to vector<128x128xf32>
    %19 = arith.addf %16, %18 : vector<128x128xf32>
    %cst_13 = arith.constant dense<0.000000e+00> : vector<128xf32>
    %20 = vector.multi_reduction <add>, %19, %cst_13 [1] : vector<128x128xf32> to vector<128xf32>
    %21 = vector.shape_cast %20 : vector<128xf32> to vector<128x1xf32>
    %cst_14 = arith.constant 1.000000e-24 : f32
    %22 = vector.broadcast %cst_14 : f32 to vector<128x1xf32>
    %23 = arith.maximumf %21, %22 : vector<128x1xf32>
    %24 = math.rsqrt %23 : vector<128x1xf32>
    %25 = tpu.iota {dimensions = array<i32: 1>} : vector<128x128xi32>
    %c0_15 = arith.constant 0 : index
    %c0_16 = arith.constant 0 : index
    %26 = vector.load %arg2[%c0_15, %c0_16] : memref<128x1xi32, #tpu.memory_space<vmem>>, vector<128x1xi32>
    %27 = vector.broadcast %26 : vector<128x1xi32> to vector<128x128xi32>
    %28 = arith.cmpi eq, %27, %25 : vector<128x128xi32>
    %29 = arith.extui %28 : vector<128x128xi1> to vector<128x128xi32>
    %30 = arith.sitofp %29 : vector<128x128xi32> to vector<128x128xf32>
    %31 = arith.truncf %30 : vector<128x128xf32> to vector<128x128xbf16>
    %c0_17 = arith.constant 0 : index
    %c0_18 = arith.constant 0 : index
    %32 = vector.load %arg7[%c0_17, %c0_18] : memref<128x128xbf16, #tpu.memory_space<vmem>>, vector<128x128xbf16>
    %cst_19 = arith.constant dense<0.000000e+00> : vector<128x128xf32>
    %33 = tpu.matmul %31, %32, %cst_19 {dimension_numbers = #tpu.dot_dimension_numbers<[1], [0], [0], [1], [0, 0, 1, 1], [], []>} : vector<128x128xbf16>, vector<128x128xbf16>, vector<128x128xf32> -> vector<128x128xf32>
    %34 = vector.broadcast %24 : vector<128x1xf32> to vector<128x128xf32>
    %35 = arith.mulf %34, %10 : vector<128x128xf32>
    %36 = arith.addf %35, %33 : vector<128x128xf32>
    %37 = arith.truncf %36 : vector<128x128xf32> to vector<128x128xbf16>
    %c0_20 = arith.constant 0 : index
    %c0_21 = arith.constant 0 : index
    %38 = vector.load %arg8[%c0_20, %c0_21] : memref<128x128xbf16, #tpu.memory_space<vmem>>, vector<128x128xbf16>
    tpu.vector_store %arg8[%c0_20, %c0_21], %37 {strides = array<i32>} : memref<128x128xbf16, #tpu.memory_space<vmem>>, vector<128x128xbf16>,
    return
  }
  func.func @transform_0(%arg0: i32) -> (i32, i32) {
    %c0_i32 = arith.constant 0 : i32
    %c0_i32_0 = arith.constant 0 : i32
    return %arg0, %c0_i32 : i32, i32
  }
  func.func @transform_1(%arg0: i32) -> (i32, i32) {
    %c0_i32 = arith.constant 0 : i32
    %c0_i32_0 = arith.constant 0 : i32
    return %arg0, %c0_i32 : i32, i32
  }
  func.func @transform_2(%arg0: i32) -> (i32, i32) {
    %c0_i32 = arith.constant 0 : i32
    %c0_i32_0 = arith.constant 0 : i32
    %c0_i32_1 = arith.constant 0 : i32
    return %c0_i32, %c0_i32_0 : i32, i32
  }
  func.func @transform_3(%arg0: i32) -> (i32, i32) {
    %c0_i32 = arith.constant 0 : i32
    %c0_i32_0 = arith.constant 0 : i32
    %c0_i32_1 = arith.constant 0 : i32
    return %c0_i32, %c0_i32_0 : i32, i32
  }
  func.func @transform_4(%arg0: i32) -> (i32, i32) {
    %c0_i32 = arith.constant 0 : i32
    %c0_i32_0 = arith.constant 0 : i32
    %c0_i32_1 = arith.constant 0 : i32
    return %c0_i32, %c0_i32_0 : i32, i32
  }
  func.func @transform_5(%arg0: i32) -> (i32, i32) {
    %c0_i32 = arith.constant 0 : i32
    %c0_i32_0 = arith.constant 0 : i32
    %c0_i32_1 = arith.constant 0 : i32
    return %c0_i32, %c0_i32_0 : i32, i32
  }
  func.func @transform_6(%arg0: i32) -> (i32, i32) {
    %c0_i32 = arith.constant 0 : i32
    %c0_i32_0 = arith.constant 0 : i32
    %c0_i32_1 = arith.constant 0 : i32
    return %c0_i32, %c0_i32_0 : i32, i32
  }
  func.func @transform_7(%arg0: i32) -> (i32, i32) {
    %c0_i32 = arith.constant 0 : i32
    %c0_i32_0 = arith.constant 0 : i32
    return %arg0, %c0_i32 : i32, i32
  }
}

</mosaic_0001>

<llo_original>
// kernel: _rel_dists_jit.1
$region0: #{_rel_dists_jit.1}
  #allocation0 [shape = 'u32[]', space=smem, size = 0x4, offset = 0x4, fixed_abs, tag = 'smem constant byte address 0x4 - core index']
  #allocation1 [shape = 'u32[144,128]{1,0:T(1,128)}', space=vmem, size = 0x12000, scoped, tag = 'internal scratch']
  %s0 = inlined_call_operand.vmem [shape: bf16[128,128], index: 0, kind: input, shape index: {}]
  %s1 = inlined_call_operand.vmem [shape: s32[128,1], index: 1, kind: input, shape index: {}]
  %s2 = inlined_call_operand.vmem [shape: bf16[128,128], index: 2, kind: input, shape index: {}]
  %s3 = inlined_call_operand.vmem [shape: bf16[128,128], index: 3, kind: input, shape index: {}]
  %s4 = inlined_call_operand.vmem [shape: bf16[128,128], index: 4, kind: input, shape index: {}]
  %s5 = inlined_call_operand.vmem [shape: f32[3,128], index: 5, kind: input, shape index: {}]
  %s6 = inlined_call_operand.vmem [shape: bf16[128,128], index: 6, kind: input, shape index: {}]
  %s7 = inlined_call_operand.vmem [shape: bf16[128,128], index: 7, kind: output, shape index: {}]
  %s8 = sld [smem:[#allocation0]]
  $region38: #{_rel_dists_jit.1} parent=0
    _
  %s10 = ssub.s32 1, %s8
  %s11 = scalar_select 0, %s10, %s8
  // Predicated region
  $region2: #{_rel_dists_jit.1} parent=0 // pred_check
    _
  $region3: #{_rel_dists_jit.1} parent=0 // pred_check_branch
    %13 = sbr.rel (0) target = $region5
  $region4: #{_rel_dists_jit.1} parent=0 // pred_region
    _
  $region5: #{_rel_dists_jit.1} parent=0 // pred_fallthru
    _
  // Predicated region
  $region6: #{_rel_dists_jit.1} parent=0 // pred_check
    _
  $region7: #{_rel_dists_jit.1} parent=0 // pred_check_branch
    %15 = sbr.rel (0) target = $region9
  $region8: #{_rel_dists_jit.1} parent=0 // pred_region
    _
  $region9: #{_rel_dists_jit.1} parent=0 // pred_fallthru
    _
  // Predicated region
  $region10: #{_rel_dists_jit.1} parent=0 // pred_check
    _
  $region11: #{_rel_dists_jit.1} parent=0 // pred_check_branch
    %17 = sbr.rel (0) target = $region13
  $region12: #{_rel_dists_jit.1} parent=0 // pred_region
    _
  $region13: #{_rel_dists_jit.1} parent=0 // pred_fallthru
    _
  // Predicated region
  $region14: #{_rel_dists_jit.1} parent=0 // pred_check
    _
  $region15: #{_rel_dists_jit.1} parent=0 // pred_check_branch
    %19 = sbr.rel (0) target = $region17
  $region16: #{_rel_dists_jit.1} parent=0 // pred_region
    _
  $region17: #{_rel_dists_jit.1} parent=0 // pred_fallthru
    _
  // Predicated region
  $region18: #{_rel_dists_jit.1} parent=0 // pred_check
    _
  $region19: #{_rel_dists_jit.1} parent=0 // pred_check_branch
    %21 = sbr.rel (0) target = $region21
  $region20: #{_rel_dists_jit.1} parent=0 // pred_region
    _
  $region21: #{_rel_dists_jit.1} parent=0 // pred_fallthru
    _
  // Predicated region
  $region22: #{_rel_dists_jit.1} parent=0 // pred_check
    _
  $region23: #{_rel_dists_jit.1} parent=0 // pred_check_branch
    %23 = sbr.rel (0) target = $region25
  $region24: #{_rel_dists_jit.1} parent=0 // pred_region
    _
  $region25: #{_rel_dists_jit.1} parent=0 // pred_fallthru
    _
  // Predicated region
  $region26: #{_rel_dists_jit.1} parent=0 // pred_check
    _
  $region27: #{_rel_dists_jit.1} parent=0 // pred_check_branch
    %25 = sbr.rel (0) target = $region29
  $region28: #{_rel_dists_jit.1} parent=0 // pred_region
    _
  $region29: #{_rel_dists_jit.1} parent=0 // pred_fallthru
    _
  %v27 = vld [vmem:[%s0] sm:$0xf]
  %v28 = vld [vmem:[%s0 + $0x4] sm:$0xf]
  %v29 = vld [vmem:[%s0 + $0x8] sm:$0xf]
  %v30 = vld [vmem:[%s0 + $0xc] sm:$0xf]
  %v31 = vld [vmem:[%s0 + $0x10] sm:$0xf]
  %v32 = vld [vmem:[%s0 + $0x14] sm:$0xf]
  %v33 = vld [vmem:[%s0 + $0x18] sm:$0xf]
  %v34 = vld [vmem:[%s0 + $0x1c] sm:$0xf]
  %v35 = vld [vmem:[%s0 + $0x20] sm:$0xf]
  %v36 = vld [vmem:[%s0 + $0x24] sm:$0xf]
  %v37 = vld [vmem:[%s0 + $0x28] sm:$0xf]
  %v38 = vld [vmem:[%s0 + $0x2c] sm:$0xf]
  %v39 = vld [vmem:[%s0 + $0x30] sm:$0xf]
  %v40 = vld [vmem:[%s0 + $0x34] sm:$0xf]
  %v41 = vld [vmem:[%s0 + $0x38] sm:$0xf]
  %v42 = vld [vmem:[%s0 + $0x3c] sm:$0xf]
  %v43 = vld [vmem:[%s2] sm:$0xf]
  %v44 = vld [vmem:[%s2 + $0x4] sm:$0xf]
  %v45 = vld [vmem:[%s2 + $0x8] sm:$0xf]
  %v46 = vld [vmem:[%s2 + $0xc] sm:$0xf]
  %v47 = vld [vmem:[%s2 + $0x10] sm:$0xf]
  %v48 = vld [vmem:[%s2 + $0x14] sm:$0xf]
  %v49 = vld [vmem:[%s2 + $0x18] sm:$0xf]
  %v50 = vld [vmem:[%s2 + $0x1c] sm:$0xf]
  %v51 = vld [vmem:[%s2 + $0x20] sm:$0xf]
  %v52 = vld [vmem:[%s2 + $0x24] sm:$0xf]
  %v53 = vld [vmem:[%s2 + $0x28] sm:$0xf]
  %v54 = vld [vmem:[%s2 + $0x2c] sm:$0xf]
  %v55 = vld [vmem:[%s2 + $0x30] sm:$0xf]
  %v56 = vld [vmem:[%s2 + $0x34] sm:$0xf]
  %v57 = vld [vmem:[%s2 + $0x38] sm:$0xf]
  %v58 = vld [vmem:[%s2 + $0x3c] sm:$0xf]
  %v75 = vunpack.c.l.b16 %v27
  %v76 = vunpack.c.l.b16 %v28
  %v77 = vunpack.c.l.b16 %v29
  %v78 = vunpack.c.l.b16 %v30
  %v79 = vunpack.c.l.b16 %v31
  %v80 = vunpack.c.l.b16 %v32
  %v81 = vunpack.c.l.b16 %v33
  %v82 = vunpack.c.l.b16 %v34
  %v83 = vunpack.c.l.b16 %v35
  %v84 = vunpack.c.l.b16 %v36
  %v85 = vunpack.c.l.b16 %v37
  %v86 = vunpack.c.l.b16 %v38
  %v87 = vunpack.c.l.b16 %v39
  %v88 = vunpack.c.l.b16 %v40
  %v89 = vunpack.c.l.b16 %v41
  %v90 = vunpack.c.l.b16 %v42
  %v91 = vpack.c.b16 %v76, %v75
  %v92 = vpack.c.b16 %v78, %v77
  %v93 = vpack.c.b16 %v80, %v79
  %v94 = vpack.c.b16 %v82, %v81
  %v95 = vpack.c.b16 %v84, %v83
  %v96 = vpack.c.b16 %v86, %v85
  %v97 = vpack.c.b16 %v88, %v87
  %v98 = vpack.c.b16 %v90, %v89
  %v123 = vunpack.c.l.b16 %v43
  %v124 = vunpack.c.l.b16 %v44
  %v125 = vunpack.c.l.b16 %v45
  %v126 = vunpack.c.l.b16 %v46
  %v127 = vunpack.c.l.b16 %v47
  %v128 = vunpack.c.l.b16 %v48
  %v129 = vunpack.c.l.b16 %v49
  %v130 = vunpack.c.l.b16 %v50
  %v131 = vunpack.c.l.b16 %v51
  %v132 = vunpack.c.l.b16 %v52
  %v133 = vunpack.c.l.b16 %v53
  %v134 = vunpack.c.l.b16 %v54
  %v135 = vunpack.c.l.b16 %v55
  %v136 = vunpack.c.l.b16 %v56
  %v137 = vunpack.c.l.b16 %v57
  %v138 = vunpack.c.l.b16 %v58
  %v139 = vpack.c.b16 %v124, %v123
  %v140 = vpack.c.b16 %v126, %v125
  %v141 = vpack.c.b16 %v128, %v127
  %v142 = vpack.c.b16 %v130, %v129
  %v143 = vpack.c.b16 %v132, %v131
  %v144 = vpack.c.b16 %v134, %v133
  %v145 = vpack.c.b16 %v136, %v135
  %v146 = vpack.c.b16 %v138, %v137
  %155 = vmatprep.subr.bf16.mxu0 0
  %156 = vmatpush1.bf16.msra.mxu0 %v139
  %157 = vmatprep.subr.bf16.mxu0 0
  %158 = vmatpush1.bf16.msra.mxu0 %v140
  %159 = vmatprep.subr.bf16.mxu0 0
  %160 = vmatpush1.bf16.msra.mxu0 %v141
  %161 = vmatprep.subr.bf16.mxu0 0
  %162 = vmatpush1.bf16.msra.mxu0 %v142
  %163 = vmatprep.subr.bf16.mxu0 0
  %164 = vmatpush1.bf16.msra.mxu0 %v143
  %165 = vmatprep.subr.bf16.mxu0 0
  %166 = vmatpush1.bf16.msra.mxu0 %v144
  %167 = vmatprep.subr.bf16.mxu0 0
  %168 = vmatpush1.bf16.msra.mxu0 %v145
  %169 = vmatprep.subr.bf16.mxu0 0
  %170 = vmatpush1.bf16.msra.mxu0 %v146
  %171 = vmatprep.subr.bf16.mxu0 0
  %172 = vmatpush1.bf16.msra.mxu0 0
  %173 = vmatprep.subr.bf16.mxu0 0
  %174 = vmatpush1.bf16.msra.mxu0 0
  %175 = vmatprep.subr.bf16.mxu0 0
  %176 = vmatpush1.bf16.msra.mxu0 0
  %177 = vmatprep.subr.bf16.mxu0 0
  %178 = vmatpush1.bf16.msra.mxu0 0
  %179 = vmatprep.subr.bf16.mxu0 0
  %180 = vmatpush1.bf16.msra.mxu0 0
  %181 = vmatprep.subr.bf16.mxu0 0
  %182 = vmatpush1.bf16.msra.mxu0 0
  %183 = vmatprep.subr.bf16.mxu0 0
  %184 = vmatpush1.bf16.msra.mxu0 0
  %185 = vmatprep.subr.bf16.mxu0 0
  %186 = vmatpush1.bf16.msra.mxu0 0
  %187 = vmatprep.mubr.bf16.mxu0 0
  %188 = vmatmul.mubr.bf16.gmra.mrb[0].mxu0 %v91
  %v189 = vpop.f32.mrb[0].mxu0
  %v190 = vadd.f32 0.0, %v189
  %v191 = vpop.f32.mrb[0].mxu0
  %v192 = vpop.f32.mrb[0].mxu0
  %v193 = vadd.f32 0.0, %v192
  %v194 = vpop.f32.mrb[0].mxu0
  %195 = vmatprep.mubr.bf16.mxu0 0
  %196 = vmatmul.mubr.bf16.gmra.mrb[0].mxu0 %v92
  %v197 = vpop.f32.mrb[0].mxu0
  %v198 = vadd.f32 0.0, %v197
  %v199 = vpop.f32.mrb[0].mxu0
  %v200 = vpop.f32.mrb[0].mxu0
  %v201 = vadd.f32 0.0, %v200
  %v202 = vpop.f32.mrb[0].mxu0
  %203 = vmatprep.mubr.bf16.mxu0 0
  %204 = vmatmul.mubr.bf16.gmra.mrb[0].mxu0 %v93
  %v205 = vpop.f32.mrb[0].mxu0
  %v206 = vadd.f32 0.0, %v205
  %v207 = vpop.f32.mrb[0].mxu0
  %v208 = vpop.f32.mrb[0].mxu0
  %v209 = vadd.f32 0.0, %v208
  %v210 = vpop.f32.mrb[0].mxu0
  %211 = vmatprep.mubr.bf16.mxu0 0
  %212 = vmatmul.mubr.bf16.gmra.mrb[0].mxu0 %v94
  %v213 = vpop.f32.mrb[0].mxu0
  %v214 = vadd.f32 0.0, %v213
  %v215 = vpop.f32.mrb[0].mxu0
  %v216 = vpop.f32.mrb[0].mxu0
  %v217 = vadd.f32 0.0, %v216
  %v218 = vpop.f32.mrb[0].mxu0
  %219 = vmatprep.mubr.bf16.mxu0 0
  %220 = vmatmul.mubr.bf16.gmra.mrb[0].mxu0 %v95
  %v221 = vpop.f32.mrb[0].mxu0
  %v222 = vadd.f32 0.0, %v221
  %v223 = vpop.f32.mrb[0].mxu0
  %v224 = vpop.f32.mrb[0].mxu0
  %v225 = vadd.f32 0.0, %v224
  %v226 = vpop.f32.mrb[0].mxu0
  %227 = vmatprep.mubr.bf16.mxu0 0
  %228 = vmatmul.mubr.bf16.gmra.mrb[0].mxu0 %v96
  %v229 = vpop.f32.mrb[0].mxu0
  %v230 = vadd.f32 0.0, %v229
  %v231 = vpop.f32.mrb[0].mxu0
  %v232 = vpop.f32.mrb[0].mxu0
  %v233 = vadd.f32 0.0, %v232
  %v234 = vpop.f32.mrb[0].mxu0
  %235 = vmatprep.mubr.bf16.mxu0 0
  %236 = vmatmul.mubr.bf16.gmra.mrb[0].mxu0 %v97
  %v237 = vpop.f32.mrb[0].mxu0
  %v238 = vadd.f32 0.0, %v237
  %v239 = vpop.f32.mrb[0].mxu0
  %v240 = vpop.f32.mrb[0].mxu0
  %v241 = vadd.f32 0.0, %v240
  %v242 = vpop.f32.mrb[0].mxu0
  %243 = vmatprep.mubr.bf16.mxu0 0
  %244 = vmatmul.mubr.bf16.gmra.mrb[0].mxu0 %v98
  %v245 = vpop.f32.mrb[0].mxu0
  %v246 = vadd.f32 0.0, %v245
  %v247 = vpop.f32.mrb[0].mxu0
  %v248 = vpop.f32.mrb[0].mxu0
  %v249 = vadd.f32 0.0, %v248
  %v250 = vpop.f32.mrb[0].mxu0
  %251 = vdwg.mxu0
  %252 = vrot.lane.b32.xlu0 %v190, 64
  %v253 = vpop.permute.xlu0 %252
  %254 = vrot.lane.b32.xlu0 %v193, 64
  %v255 = vpop.permute.xlu0 %254
  %256 = vrot.lane.b32.xlu0 %v198, 64
  %v257 = vpop.permute.xlu0 %256
  %258 = vrot.lane.b32.xlu0 %v201, 64
  %v259 = vpop.permute.xlu0 %258
  %260 = vrot.lane.b32.xlu0 %v206, 64
  %v261 = vpop.permute.xlu0 %260
  %262 = vrot.lane.b32.xlu0 %v209, 64
  %v263 = vpop.permute.xlu0 %262
  %264 = vrot.lane.b32.xlu0 %v214, 64
  %v265 = vpop.permute.xlu0 %264
  %266 = vrot.lane.b32.xlu0 %v217, 64
  %v267 = vpop.permute.xlu0 %266
  %268 = vrot.lane.b32.xlu0 %v222, 64
  %v269 = vpop.permute.xlu0 %268
  %270 = vrot.lane.b32.xlu0 %v225, 64
  %v271 = vpop.permute.xlu0 %270
  %272 = vrot.lane.b32.xlu0 %v230, 64
  %v273 = vpop.permute.xlu0 %272
  %274 = vrot.lane.b32.xlu0 %v233, 64
  %v275 = vpop.permute.xlu0 %274
  %276 = vrot.lane.b32.xlu0 %v238, 64
  %v277 = vpop.permute.xlu0 %276
  %278 = vrot.lane.b32.xlu0 %v241, 64
  %v279 = vpop.permute.xlu0 %278
  %280 = vrot.lane.b32.xlu0 %v246, 64
  %v281 = vpop.permute.xlu0 %280
  %282 = vrot.lane.b32.xlu0 %v249, 64
  %v283 = vpop.permute.xlu0 %282
  %v284 = vmul.f32 %v190, %v253
  %v285 = vmul.f32 %v193, %v255
  %v286 = vmul.f32 %v198, %v257
  %v287 = vmul.f32 %v201, %v259
  %v288 = vmul.f32 %v206, %v261
  %v289 = vmul.f32 %v209, %v263
  %v290 = vmul.f32 %v214, %v265
  %v291 = vmul.f32 %v217, %v267
  %v292 = vmul.f32 %v222, %v269
  %v293 = vmul.f32 %v225, %v271
  %v294 = vmul.f32 %v230, %v273
  %v295 = vmul.f32 %v233, %v275
  %v296 = vmul.f32 %v238, %v277
  %v297 = vmul.f32 %v241, %v279
  %v298 = vmul.f32 %v246, %v281
  %v299 = vmul.f32 %v249, %v283
  %v300 = vpack.c.bf16 %v285, %v284
  %v301 = vpack.c.bf16 %v287, %v286
  %v302 = vpack.c.bf16 %v289, %v288
  %v303 = vpack.c.bf16 %v291, %v290
  %v304 = vpack.c.bf16 %v293, %v292
  %v305 = vpack.c.bf16 %v295, %v294
  %v306 = vpack.c.bf16 %v297, %v296
  %v307 = vpack.c.bf16 %v299, %v298
  %v308 = vld [vmem:[%s3] sm:$0xf]
  %v309 = vld [vmem:[%s3 + $0x4] sm:$0xf]
  %v310 = vld [vmem:[%s3 + $0x8] sm:$0xf]
  %v311 = vld [vmem:[%s3 + $0xc] sm:$0xf]
  %v312 = vld [vmem:[%s3 + $0x10] sm:$0xf]
  %v313 = vld [vmem:[%s3 + $0x14] sm:$0xf]
  %v314 = vld [vmem:[%s3 + $0x18] sm:$0xf]
  %v315 = vld [vmem:[%s3 + $0x1c] sm:$0xf]
  %v316 = vld [vmem:[%s3 + $0x20] sm:$0xf]
  %v317 = vld [vmem:[%s3 + $0x24] sm:$0xf]
  %v318 = vld [vmem:[%s3 + $0x28] sm:$0xf]
  %v319 = vld [vmem:[%s3 + $0x2c] sm:$0xf]
  %v320 = vld [vmem:[%s3 + $0x30] sm:$0xf]
  %v321 = vld [vmem:[%s3 + $0x34] sm:$0xf]
  %v322 = vld [vmem:[%s3 + $0x38] sm:$0xf]
  %v323 = vld [vmem:[%s3 + $0x3c] sm:$0xf]
  %v324 = vld [vmem:[%s5] sm:$0x1]
  %v325 = vlaneseq
  %v326 = vshrl.u32 %v325, 7
  %v327 = vsub.s32 0, %v326
  %v328 = vrot.slane %v324, %v327
  %v345 = vunpack.c.l.b16 %v308
  %v346 = vunpack.c.l.b16 %v309
  %v347 = vunpack.c.l.b16 %v310
  %v348 = vunpack.c.l.b16 %v311
  %v349 = vunpack.c.l.b16 %v312
  %v350 = vunpack.c.l.b16 %v313
  %v351 = vunpack.c.l.b16 %v314
  %v352 = vunpack.c.l.b16 %v315
  %v353 = vunpack.c.l.b16 %v316
  %v354 = vunpack.c.l.b16 %v317
  %v355 = vunpack.c.l.b16 %v318
  %v356 = vunpack.c.l.b16 %v319
  %v357 = vunpack.c.l.b16 %v320
  %v358 = vunpack.c.l.b16 %v321
  %v359 = vunpack.c.l.b16 %v322
  %v360 = vunpack.c.l.b16 %v323
  %v361 = vpack.c.b16 %v346, %v345
  %v362 = vpack.c.b16 %v348, %v347
  %v363 = vpack.c.b16 %v350, %v349
  %v364 = vpack.c.b16 %v352, %v351
  %v365 = vpack.c.b16 %v354, %v353
  %v366 = vpack.c.b16 %v356, %v355
  %v367 = vpack.c.b16 %v358, %v357
  %v368 = vpack.c.b16 %v360, %v359
  %377 = vmatprep.subr.bf16.mxu0 0
  %378 = vmatpush1.bf16.msra.mxu0 %v361
  %379 = vmatprep.subr.bf16.mxu0 0
  %380 = vmatpush1.bf16.msra.mxu0 %v362
  %381 = vmatprep.subr.bf16.mxu0 0
  %382 = vmatpush1.bf16.msra.mxu0 %v363
  %383 = vmatprep.subr.bf16.mxu0 0
  %384 = vmatpush1.bf16.msra.mxu0 %v364
  %385 = vmatprep.subr.bf16.mxu0 0
  %386 = vmatpush1.bf16.msra.mxu0 %v365
  %387 = vmatprep.subr.bf16.mxu0 0
  %388 = vmatpush1.bf16.msra.mxu0 %v366
  %389 = vmatprep.subr.bf16.mxu0 0
  %390 = vmatpush1.bf16.msra.mxu0 %v367
  %391 = vmatprep.subr.bf16.mxu0 0
  %392 = vmatpush1.bf16.msra.mxu0 %v368
  %393 = vmatprep.subr.bf16.mxu0 0
  %394 = vmatpush1.bf16.msra.mxu0 0
  %395 = vmatprep.subr.bf16.mxu0 0
  %396 = vmatpush1.bf16.msra.mxu0 0
  %397 = vmatprep.subr.bf16.mxu0 0
  %398 = vmatpush1.bf16.msra.mxu0 0
  %399 = vmatprep.subr.bf16.mxu0 0
  %400 = vmatpush1.bf16.msra.mxu0 0
  %401 = vmatprep.subr.bf16.mxu0 0
  %402 = vmatpush1.bf16.msra.mxu0 0
  %403 = vmatprep.subr.bf16.mxu0 0
  %404 = vmatpush1.bf16.msra.mxu0 0
  %405 = vmatprep.subr.bf16.mxu0 0
  %406 = vmatpush1.bf16.msra.mxu0 0
  %407 = vmatprep.subr.bf16.mxu0 0
  %408 = vmatpush1.bf16.msra.mxu0 0
  %409 = vmatprep.mubr.bf16.mxu0 0
  %410 = vmatmul.mubr.bf16.gmra.mrb[0].mxu0 %v300
  %v411 = vpop.f32.mrb[0].mxu0
  %v412 = vadd.f32 %v328, %v411
  %v413 = vpop.f32.mrb[0].mxu0
  %v414 = vpop.f32.mrb[0].mxu0
  %v415 = vadd.f32 %v328, %v414
  %v416 = vpop.f32.mrb[0].mxu0
  %417 = vmatprep.mubr.bf16.mxu0 0
  %418 = vmatmul.mubr.bf16.gmra.mrb[0].mxu0 %v301
  %v419 = vpop.f32.mrb[0].mxu0
  %v420 = vadd.f32 %v328, %v419
  %v421 = vpop.f32.mrb[0].mxu0
  %v422 = vpop.f32.mrb[0].mxu0
  %v423 = vadd.f32 %v328, %v422
  %v424 = vpop.f32.mrb[0].mxu0
  %425 = vmatprep.mubr.bf16.mxu0 0
  %426 = vmatmul.mubr.bf16.gmra.mrb[0].mxu0 %v302
  %v427 = vpop.f32.mrb[0].mxu0
  %v428 = vadd.f32 %v328, %v427
  %v429 = vpop.f32.mrb[0].mxu0
  %v430 = vpop.f32.mrb[0].mxu0
  %v431 = vadd.f32 %v328, %v430
  %v432 = vpop.f32.mrb[0].mxu0
  %433 = vmatprep.mubr.bf16.mxu0 0
  %434 = vmatmul.mubr.bf16.gmra.mrb[0].mxu0 %v303
  %v435 = vpop.f32.mrb[0].mxu0
  %v436 = vadd.f32 %v328, %v435
  %v437 = vpop.f32.mrb[0].mxu0
  %v438 = vpop.f32.mrb[0].mxu0
  %v439 = vadd.f32 %v328, %v438
  %v440 = vpop.f32.mrb[0].mxu0
  %441 = vmatprep.mubr.bf16.mxu0 0
  %442 = vmatmul.mubr.bf16.gmra.mrb[0].mxu0 %v304
  %v443 = vpop.f32.mrb[0].mxu0
  %v444 = vadd.f32 %v328, %v443
  %v445 = vpop.f32.mrb[0].mxu0
  %v446 = vpop.f32.mrb[0].mxu0
  %v447 = vadd.f32 %v328, %v446
  %v448 = vpop.f32.mrb[0].mxu0
  %449 = vmatprep.mubr.bf16.mxu0 0
  %450 = vmatmul.mubr.bf16.gmra.mrb[0].mxu0 %v305
  %v451 = vpop.f32.mrb[0].mxu0
  %v452 = vadd.f32 %v328, %v451
  %v453 = vpop.f32.mrb[0].mxu0
  %v454 = vpop.f32.mrb[0].mxu0
  %v455 = vadd.f32 %v328, %v454
  %v456 = vpop.f32.mrb[0].mxu0
  %457 = vmatprep.mubr.bf16.mxu0 0
  %458 = vmatmul.mubr.bf16.gmra.mrb[0].mxu0 %v306
  %v459 = vpop.f32.mrb[0].mxu0
  %v460 = vadd.f32 %v328, %v459
  %v461 = vpop.f32.mrb[0].mxu0
  %v462 = vpop.f32.mrb[0].mxu0
  %v463 = vadd.f32 %v328, %v462
  %v464 = vpop.f32.mrb[0].mxu0
  %465 = vmatprep.mubr.bf16.mxu0 0
  %466 = vmatmul.mubr.bf16.gmra.mrb[0].mxu0 %v307
  %v467 = vpop.f32.mrb[0].mxu0
  %v468 = vadd.f32 %v328, %v467
  %v469 = vpop.f32.mrb[0].mxu0
  %v470 = vpop.f32.mrb[0].mxu0
  %v471 = vadd.f32 %v328, %v470
  %v472 = vpop.f32.mrb[0].mxu0
  %473 = vdwg.mxu0
  %v474 = vld [vmem:[%s4] sm:$0xf]
  %v475 = vld [vmem:[%s4 + $0x4] sm:$0xf]
  %v476 = vld [vmem:[%s4 + $0x8] sm:$0xf]
  %v477 = vld [vmem:[%s4 + $0xc] sm:$0xf]
  %v478 = vld [vmem:[%s4 + $0x10] sm:$0xf]
  %v479 = vld [vmem:[%s4 + $0x14] sm:$0xf]
  %v480 = vld [vmem:[%s4 + $0x18] sm:$0xf]
  %v481 = vld [vmem:[%s4 + $0x1c] sm:$0xf]
  %v482 = vld [vmem:[%s4 + $0x20] sm:$0xf]
  %v483 = vld [vmem:[%s4 + $0x24] sm:$0xf]
  %v484 = vld [vmem:[%s4 + $0x28] sm:$0xf]
  %v485 = vld [vmem:[%s4 + $0x2c] sm:$0xf]
  %v486 = vld [vmem:[%s4 + $0x30] sm:$0xf]
  %v487 = vld [vmem:[%s4 + $0x34] sm:$0xf]
  %v488 = vld [vmem:[%s4 + $0x38] sm:$0xf]
  %v489 = vld [vmem:[%s4 + $0x3c] sm:$0xf]
  %v490 = vld [vmem:[%s5 + $0x1] sm:$0x1]
  %v491 = vlaneseq
  %v492 = vshrl.u32 %v491, 7
  %v493 = vsub.s32 0, %v492
  %v494 = vrot.slane %v490, %v493
  %v511 = vunpack.c.l.b16 %v474
  %v512 = vunpack.c.l.b16 %v475
  %v513 = vunpack.c.l.b16 %v476
  %v514 = vunpack.c.l.b16 %v477
  %v515 = vunpack.c.l.b16 %v478
  %v516 = vunpack.c.l.b16 %v479
  %v517 = vunpack.c.l.b16 %v480
  %v518 = vunpack.c.l.b16 %v481
  %v519 = vunpack.c.l.b16 %v482
  %v520 = vunpack.c.l.b16 %v483
  %v521 = vunpack.c.l.b16 %v484
  %v522 = vunpack.c.l.b16 %v485
  %v523 = vunpack.c.l.b16 %v486
  %v524 = vunpack.c.l.b16 %v487
  %v525 = vunpack.c.l.b16 %v488
  %v526 = vunpack.c.l.b16 %v489
  %v527 = vpack.c.b16 %v512, %v511
  %v528 = vpack.c.b16 %v514, %v513
  %v529 = vpack.c.b16 %v516, %v515
  %v530 = vpack.c.b16 %v518, %v517
  %v531 = vpack.c.b16 %v520, %v519
  %v532 = vpack.c.b16 %v522, %v521
  %v533 = vpack.c.b16 %v524, %v523
  %v534 = vpack.c.b16 %v526, %v525
  %543 = vmatprep.subr.bf16.mxu0 0
  %544 = vmatpush1.bf16.msra.mxu0 %v527
  %545 = vmatprep.subr.bf16.mxu0 0
  %546 = vmatpush1.bf16.msra.mxu0 %v528
  %547 = vmatprep.subr.bf16.mxu0 0
  %548 = vmatpush1.bf16.msra.mxu0 %v529
  %549 = vmatprep.subr.bf16.mxu0 0
  %550 = vmatpush1.bf16.msra.mxu0 %v530
  %551 = vmatprep.subr.bf16.mxu0 0
  %552 = vmatpush1.bf16.msra.mxu0 %v531
  %553 = vmatprep.subr.bf16.mxu0 0
  %554 = vmatpush1.bf16.msra.mxu0 %v532
  %555 = vmatprep.subr.bf16.mxu0 0
  %556 = vmatpush1.bf16.msra.mxu0 %v533
  %557 = vmatprep.subr.bf16.mxu0 0
  %558 = vmatpush1.bf16.msra.mxu0 %v534
  %559 = vmatprep.subr.bf16.mxu0 0
  %560 = vmatpush1.bf16.msra.mxu0 0
  %561 = vmatprep.subr.bf16.mxu0 0
  %562 = vmatpush1.bf16.msra.mxu0 0
  %563 = vmatprep.subr.bf16.mxu0 0
  %564 = vmatpush1.bf16.msra.mxu0 0
  %565 = vmatprep.subr.bf16.mxu0 0
  %566 = vmatpush1.bf16.msra.mxu0 0
  %567 = vmatprep.subr.bf16.mxu0 0
  %568 = vmatpush1.bf16.msra.mxu0 0
  %569 = vmatprep.subr.bf16.mxu0 0
  %570 = vmatpush1.bf16.msra.mxu0 0
  %571 = vmatprep.subr.bf16.mxu0 0
  %572 = vmatpush1.bf16.msra.mxu0 0
  %573 = vmatprep.subr.bf16.mxu0 0
  %574 = vmatpush1.bf16.msra.mxu0 0
  %575 = vmatprep.mubr.bf16.mxu0 0
  %576 = vmatmul.mubr.bf16.gmra.mrb[0].mxu0 %v300
  %v577 = vpop.f32.mrb[0].mxu0
  %v578 = vadd.f32 %v494, %v577
  %v579 = vpop.f32.mrb[0].mxu0
  %v580 = vpop.f32.mrb[0].mxu0
  %v581 = vadd.f32 %v494, %v580
  %v582 = vpop.f32.mrb[0].mxu0
  %583 = vmatprep.mubr.bf16.mxu0 0
  %584 = vmatmul.mubr.bf16.gmra.mrb[0].mxu0 %v301
  %v585 = vpop.f32.mrb[0].mxu0
  %v586 = vadd.f32 %v494, %v585
  %v587 = vpop.f32.mrb[0].mxu0
  %v588 = vpop.f32.mrb[0].mxu0
  %v589 = vadd.f32 %v494, %v588
  %v590 = vpop.f32.mrb[0].mxu0
  %591 = vmatprep.mubr.bf16.mxu0 0
  %592 = vmatmul.mubr.bf16.gmra.mrb[0].mxu0 %v302
  %v593 = vpop.f32.mrb[0].mxu0
  %v594 = vadd.f32 %v494, %v593
  %v595 = vpop.f32.mrb[0].mxu0
  %v596 = vpop.f32.mrb[0].mxu0
  %v597 = vadd.f32 %v494, %v596
  %v598 = vpop.f32.mrb[0].mxu0
  %599 = vmatprep.mubr.bf16.mxu0 0
  %600 = vmatmul.mubr.bf16.gmra.mrb[0].mxu0 %v303
  %v601 = vpop.f32.mrb[0].mxu0
  %v602 = vadd.f32 %v494, %v601
  %v603 = vpop.f32.mrb[0].mxu0
  %v604 = vpop.f32.mrb[0].mxu0
  %v605 = vadd.f32 %v494, %v604
  %v606 = vpop.f32.mrb[0].mxu0
  %607 = vmatprep.mubr.bf16.mxu0 0
  %608 = vmatmul.mubr.bf16.gmra.mrb[0].mxu0 %v304
  %v609 = vpop.f32.mrb[0].mxu0
  %v610 = vadd.f32 %v494, %v609
  %v611 = vpop.f32.mrb[0].mxu0
  %v612 = vpop.f32.mrb[0].mxu0
  %v613 = vadd.f32 %v494, %v612
  %v614 = vpop.f32.mrb[0].mxu0
  %615 = vmatprep.mubr.bf16.mxu0 0
  %616 = vmatmul.mubr.bf16.gmra.mrb[0].mxu0 %v305
  %v617 = vpop.f32.mrb[0].mxu0
  %v618 = vadd.f32 %v494, %v617
  %v619 = vpop.f32.mrb[0].mxu0
  %v620 = vpop.f32.mrb[0].mxu0
  %v621 = vadd.f32 %v494, %v620
  %v622 = vpop.f32.mrb[0].mxu0
  %623 = vmatprep.mubr.bf16.mxu0 0
  %624 = vmatmul.mubr.bf16.gmra.mrb[0].mxu0 %v306
  %v625 = vpop.f32.mrb[0].mxu0
  %v626 = vadd.f32 %v494, %v625
  %v627 = vpop.f32.mrb[0].mxu0
  %v628 = vpop.f32.mrb[0].mxu0
  %v629 = vadd.f32 %v494, %v628
  %v630 = vpop.f32.mrb[0].mxu0
  %631 = vmatprep.mubr.bf16.mxu0 0
  %632 = vmatmul.mubr.bf16.gmra.mrb[0].mxu0 %v307
  %v633 = vpop.f32.mrb[0].mxu0
  %v634 = vadd.f32 %v494, %v633
  %v635 = vpop.f32.mrb[0].mxu0
  %v636 = vpop.f32.mrb[0].mxu0
  %v637 = vadd.f32 %v494, %v636
  %v638 = vpop.f32.mrb[0].mxu0
  %639 = vdwg.mxu0
  %v640 = vmul.f32 %v578, %v284
  %v641 = vmul.f32 %v581, %v285
  %v642 = vmul.f32 %v586, %v286
  %v643 = vmul.f32 %v589, %v287
  %v644 = vmul.f32 %v594, %v288
  %v645 = vmul.f32 %v597, %v289
  %v646 = vmul.f32 %v602, %v290
  %v647 = vmul.f32 %v605, %v291
  %v648 = vmul.f32 %v610, %v292
  %v649 = vmul.f32 %v613, %v293
  %v650 = vmul.f32 %v618, %v294
  %v651 = vmul.f32 %v621, %v295
  %v652 = vmul.f32 %v626, %v296
  %v653 = vmul.f32 %v629, %v297
  %v654 = vmul.f32 %v634, %v298
  %v655 = vmul.f32 %v637, %v299
  %v656 = vld [vmem:[%s5 + $0x2] sm:$0x1]
  %v657 = vlaneseq
  %v658 = vshrl.u32 %v657, 7
  %v659 = vsub.s32 0, %v658
  %v660 = vrot.slane %v656, %v659
  %v661 = vadd.f32 %v640, %v660
  %v662 = vadd.f32 %v641, %v660
  %v663 = vadd.f32 %v642, %v660
  %v664 = vadd.f32 %v643, %v660
  %v665 = vadd.f32 %v644, %v660
  %v666 = vadd.f32 %v645, %v660
  %v667 = vadd.f32 %v646, %v660
  %v668 = vadd.f32 %v647, %v660
  %v669 = vadd.f32 %v648, %v660
  %v670 = vadd.f32 %v649, %v660
  %v671 = vadd.f32 %v650, %v660
  %v672 = vadd.f32 %v651, %v660
  %v673 = vadd.f32 %v652, %v660
  %v674 = vadd.f32 %v653, %v660
  %v675 = vadd.f32 %v654, %v660
  %v676 = vadd.f32 %v655, %v660
  %677 = vadd.xlane.f32.xlu0 %v661
  %v678 = vpop.xlane.xlu0 %677
  %679 = vadd.xlane.f32.xlu0 %v662
  %v680 = vpop.xlane.xlu0 %679
  %681 = vadd.xlane.f32.xlu0 %v663
  %v682 = vpop.xlane.xlu0 %681
  %683 = vadd.xlane.f32.xlu0 %v664
  %v684 = vpop.xlane.xlu0 %683
  %685 = vadd.xlane.f32.xlu0 %v665
  %v686 = vpop.xlane.xlu0 %685
  %687 = vadd.xlane.f32.xlu0 %v666
  %v688 = vpop.xlane.xlu0 %687
  %689 = vadd.xlane.f32.xlu0 %v667
  %v690 = vpop.xlane.xlu0 %689
  %691 = vadd.xlane.f32.xlu0 %v668
  %v692 = vpop.xlane.xlu0 %691
  %693 = vadd.xlane.f32.xlu0 %v669
  %v694 = vpop.xlane.xlu0 %693
  %695 = vadd.xlane.f32.xlu0 %v670
  %v696 = vpop.xlane.xlu0 %695
  %697 = vadd.xlane.f32.xlu0 %v671
  %v698 = vpop.xlane.xlu0 %697
  %699 = vadd.xlane.f32.xlu0 %v672
  %v700 = vpop.xlane.xlu0 %699
  %701 = vadd.xlane.f32.xlu0 %v673
  %v702 = vpop.xlane.xlu0 %701
  %703 = vadd.xlane.f32.xlu0 %v674
  %v704 = vpop.xlane.xlu0 %703
  %705 = vadd.xlane.f32.xlu0 %v675
  %v706 = vpop.xlane.xlu0 %705
  %707 = vadd.xlane.f32.xlu0 %v676
  %v708 = vpop.xlane.xlu0 %707
  %v709 = vmax.f32 %v678, 1e-24
  %v710 = vmax.f32 %v680, 1e-24
  %v711 = vmax.f32 %v682, 1e-24
  %v712 = vmax.f32 %v684, 1e-24
  %v713 = vmax.f32 %v686, 1e-24
  %v714 = vmax.f32 %v688, 1e-24
  %v715 = vmax.f32 %v690, 1e-24
  %v716 = vmax.f32 %v692, 1e-24
  %v717 = vmax.f32 %v694, 1e-24
  %v718 = vmax.f32 %v696, 1e-24
  %v719 = vmax.f32 %v698, 1e-24
  %v720 = vmax.f32 %v700, 1e-24
  %v721 = vmax.f32 %v702, 1e-24
  %v722 = vmax.f32 %v704, 1e-24
  %v723 = vmax.f32 %v706, 1e-24
  %v724 = vmax.f32 %v708, 1e-24
  %v725 = vrsqrt.pop %v709
  %v726 = vrsqrt.pop %v710
  %v727 = vrsqrt.pop %v711
  %v728 = vrsqrt.pop %v712
  %v729 = vrsqrt.pop %v713
  %v730 = vrsqrt.pop %v714
  %v731 = vrsqrt.pop %v715
  %v732 = vrsqrt.pop %v716
  %v733 = vrsqrt.pop %v717
  %v734 = vrsqrt.pop %v718
  %v735 = vrsqrt.pop %v719
  %v736 = vrsqrt.pop %v720
  %v737 = vrsqrt.pop %v721
  %v738 = vrsqrt.pop %v722
  %v739 = vrsqrt.pop %v723
  %v740 = vrsqrt.pop %v724
  %v741 = vlaneseq
  %v742 = vand.u32 %v741, 127
  %v743 = vld [vmem:[%s1] sm:$0xff]
  %v744 = vld [vmem:[%s1 + $0x8] sm:$0xff]
  %v745 = vld [vmem:[%s1 + $0x10] sm:$0xff]
  %v746 = vld [vmem:[%s1 + $0x18] sm:$0xff]
  %v747 = vld [vmem:[%s1 + $0x20] sm:$0xff]
  %v748 = vld [vmem:[%s1 + $0x28] sm:$0xff]
  %v749 = vld [vmem:[%s1 + $0x30] sm:$0xff]
  %v750 = vld [vmem:[%s1 + $0x38] sm:$0xff]
  %v751 = vld [vmem:[%s1 + $0x40] sm:$0xff]
  %v752 = vld [vmem:[%s1 + $0x48] sm:$0xff]
  %v753 = vld [vmem:[%s1 + $0x50] sm:$0xff]
  %v754 = vld [vmem:[%s1 + $0x58] sm:$0xff]
  %v755 = vld [vmem:[%s1 + $0x60] sm:$0xff]
  %v756 = vld [vmem:[%s1 + $0x68] sm:$0xff]
  %v757 = vld [vmem:[%s1 + $0x70] sm:$0xff]
  %v758 = vld [vmem:[%s1 + $0x78] sm:$0xff]
  %759 = vset.pattern.permute.xlu0 0
  %760 = vperm.xlu0 %759, %v743
  %v761 = vpop.permute.xlu0 %760
  %762 = vset.pattern.permute.xlu0 0
  %763 = vperm.xlu0 %762, %v744
  %v764 = vpop.permute.xlu0 %763
  %765 = vset.pattern.permute.xlu0 0
  %766 = vperm.xlu0 %765, %v745
  %v767 = vpop.permute.xlu0 %766
  %768 = vset.pattern.permute.xlu0 0
  %769 = vperm.xlu0 %768, %v746
  %v770 = vpop.permute.xlu0 %769
  %771 = vset.pattern.permute.xlu0 0
  %772 = vperm.xlu0 %771, %v747
  %v773 = vpop.permute.xlu0 %772
  %774 = vset.pattern.permute.xlu0 0
  %775 = vperm.xlu0 %774, %v748
  %v776 = vpop.permute.xlu0 %775
  %777 = vset.pattern.permute.xlu0 0
  %778 = vperm.xlu0 %777, %v749
  %v779 = vpop.permute.xlu0 %778
  %780 = vset.pattern.permute.xlu0 0
  %781 = vperm.xlu0 %780, %v750
  %v782 = vpop.permute.xlu0 %781
  %783 = vset.pattern.permute.xlu0 0
  %784 = vperm.xlu0 %783, %v751
  %v785 = vpop.permute.xlu0 %784
  %786 = vset.pattern.permute.xlu0 0
  %787 = vperm.xlu0 %786, %v752
  %v788 = vpop.permute.xlu0 %787
  %789 = vset.pattern.permute.xlu0 0
  %790 = vperm.xlu0 %789, %v753
  %v791 = vpop.permute.xlu0 %790
  %792 = vset.pattern.permute.xlu0 0
  %793 = vperm.xlu0 %792, %v754
  %v794 = vpop.permute.xlu0 %793
  %795 = vset.pattern.permute.xlu0 0
  %796 = vperm.xlu0 %795, %v755
  %v797 = vpop.permute.xlu0 %796
  %798 = vset.pattern.permute.xlu0 0
  %799 = vperm.xlu0 %798, %v756
  %v800 = vpop.permute.xlu0 %799
  %801 = vset.pattern.permute.xlu0 0
  %802 = vperm.xlu0 %801, %v757
  %v803 = vpop.permute.xlu0 %802
  %804 = vset.pattern.permute.xlu0 0
  %805 = vperm.xlu0 %804, %v758
  %v806 = vpop.permute.xlu0 %805
  %vm807 = vcmp.eq.s32.totalorder %v761, %v742
  %vm808 = vcmp.eq.s32.totalorder %v764, %v742
  %vm809 = vcmp.eq.s32.totalorder %v767, %v742
  %vm810 = vcmp.eq.s32.totalorder %v770, %v742
  %vm811 = vcmp.eq.s32.totalorder %v773, %v742
  %vm812 = vcmp.eq.s32.totalorder %v776, %v742
  %vm813 = vcmp.eq.s32.totalorder %v779, %v742
  %vm814 = vcmp.eq.s32.totalorder %v782, %v742
  %vm815 = vcmp.eq.s32.totalorder %v785, %v742
  %vm816 = vcmp.eq.s32.totalorder %v788, %v742
  %vm817 = vcmp.eq.s32.totalorder %v791, %v742
  %vm818 = vcmp.eq.s32.totalorder %v794, %v742
  %vm819 = vcmp.eq.s32.totalorder %v797, %v742
  %vm820 = vcmp.eq.s32.totalorder %v800, %v742
  %vm821 = vcmp.eq.s32.totalorder %v803, %v742
  %vm822 = vcmp.eq.s32.totalorder %v806, %v742
  %v823 = vsel %vm807, 1, 0
  %v824 = vsel %vm808, 1, 0
  %v825 = vsel %vm809, 1, 0
  %v826 = vsel %vm810, 1, 0
  %v827 = vsel %vm811, 1, 0
  %v828 = vsel %vm812, 1, 0
  %v829 = vsel %vm813, 1, 0
  %v830 = vsel %vm814, 1, 0
  %v831 = vsel %vm815, 1, 0
  %v832 = vsel %vm816, 1, 0
  %v833 = vsel %vm817, 1, 0
  %v834 = vsel %vm818, 1, 0
  %v835 = vsel %vm819, 1, 0
  %v836 = vsel %vm820, 1, 0
  %v837 = vsel %vm821, 1, 0
  %v838 = vsel %vm822, 1, 0
  %v839 = vcvt.s32.f32 %v823
  %v840 = vcvt.s32.f32 %v824
  %v841 = vcvt.s32.f32 %v825
  %v842 = vcvt.s32.f32 %v826
  %v843 = vcvt.s32.f32 %v827
  %v844 = vcvt.s32.f32 %v828
  %v845 = vcvt.s32.f32 %v829
  %v846 = vcvt.s32.f32 %v830
  %v847 = vcvt.s32.f32 %v831
  %v848 = vcvt.s32.f32 %v832
  %v849 = vcvt.s32.f32 %v833
  %v850 = vcvt.s32.f32 %v834
  %v851 = vcvt.s32.f32 %v835
  %v852 = vcvt.s32.f32 %v836
  %v853 = vcvt.s32.f32 %v837
  %v854 = vcvt.s32.f32 %v838
  %v855 = vpack.c.bf16 %v840, %v839
  %v856 = vpack.c.bf16 %v842, %v841
  %v857 = vpack.c.bf16 %v844, %v843
  %v858 = vpack.c.bf16 %v846, %v845
  %v859 = vpack.c.bf16 %v848, %v847
  %v860 = vpack.c.bf16 %v850, %v849
  %v861 = vpack.c.bf16 %v852, %v851
  %v862 = vpack.c.bf16 %v854, %v853
  %v863 = vld [vmem:[%s6] sm:$0xf]
  %v864 = vld [vmem:[%s6 + $0x4] sm:$0xf]
  %v865 = vld [vmem:[%s6 + $0x8] sm:$0xf]
  %v866 = vld [vmem:[%s6 + $0xc] sm:$0xf]
  %v867 = vld [vmem:[%s6 + $0x10] sm:$0xf]
  %v868 = vld [vmem:[%s6 + $0x14] sm:$0xf]
  %v869 = vld [vmem:[%s6 + $0x18] sm:$0xf]
  %v870 = vld [vmem:[%s6 + $0x1c] sm:$0xf]
  %v871 = vld [vmem:[%s6 + $0x20] sm:$0xf]
  %v872 = vld [vmem:[%s6 + $0x24] sm:$0xf]
  %v873 = vld [vmem:[%s6 + $0x28] sm:$0xf]
  %v874 = vld [vmem:[%s6 + $0x2c] sm:$0xf]
  %v875 = vld [vmem:[%s6 + $0x30] sm:$0xf]
  %v876 = vld [vmem:[%s6 + $0x34] sm:$0xf]
  %v877 = vld [vmem:[%s6 + $0x38] sm:$0xf]
  %v878 = vld [vmem:[%s6 + $0x3c] sm:$0xf]
  %v895 = vunpack.c.l.b16 %v863
  %v896 = vunpack.c.l.b16 %v864
  %v897 = vunpack.c.l.b16 %v865
  %v898 = vunpack.c.l.b16 %v866
  %v899 = vunpack.c.l.b16 %v867
  %v900 = vunpack.c.l.b16 %v868
  %v901 = vunpack.c.l.b16 %v869
  %v902 = vunpack.c.l.b16 %v870
  %v903 = vunpack.c.l.b16 %v871
  %v904 = vunpack.c.l.b16 %v872
  %v905 = vunpack.c.l.b16 %v873
  %v906 = vunpack.c.l.b16 %v874
  %v907 = vunpack.c.l.b16 %v875
  %v908 = vunpack.c.l.b16 %v876
  %v909 = vunpack.c.l.b16 %v877
  %v910 = vunpack.c.l.b16 %v878
  %v911 = vpack.c.b16 %v896, %v895
  %v912 = vpack.c.b16 %v898, %v897
  %v913 = vpack.c.b16 %v900, %v899
  %v914 = vpack.c.b16 %v902, %v901
  %v915 = vpack.c.b16 %v904, %v903
  %v916 = vpack.c.b16 %v906, %v905
  %v917 = vpack.c.b16 %v908, %v907
  %v918 = vpack.c.b16 %v910, %v909
  %927 = vmatprep.subr.bf16.mxu0 0
  %928 = vmatpush1.bf16.msra.mxu0 %v911
  %929 = vmatprep.subr.bf16.mxu0 0
  %930 = vmatpush1.bf16.msra.mxu0 %v912
  %931 = vmatprep.subr.bf16.mxu0 0
  %932 = vmatpush1.bf16.msra.mxu0 %v913
  %933 = vmatprep.subr.bf16.mxu0 0
  %934 = vmatpush1.bf16.msra.mxu0 %v914
  %935 = vmatprep.subr.bf16.mxu0 0
  %936 = vmatpush1.bf16.msra.mxu0 %v915
  %937 = vmatprep.subr.bf16.mxu0 0
  %938 = vmatpush1.bf16.msra.mxu0 %v916
  %939 = vmatprep.subr.bf16.mxu0 0
  %940 = vmatpush1.bf16.msra.mxu0 %v917
  %941 = vmatprep.subr.bf16.mxu0 0
  %942 = vmatpush1.bf16.msra.mxu0 %v918
  %943 = vmatprep.subr.bf16.mxu0 0
  %944 = vmatpush1.bf16.msra.mxu0 0
  %945 = vmatprep.subr.bf16.mxu0 0
  %946 = vmatpush1.bf16.msra.mxu0 0
  %947 = vmatprep.subr.bf16.mxu0 0
  %948 = vmatpush1.bf16.msra.mxu0 0
  %949 = vmatprep.subr.bf16.mxu0 0
  %950 = vmatpush1.bf16.msra.mxu0 0
  %951 = vmatprep.subr.bf16.mxu0 0
  %952 = vmatpush1.bf16.msra.mxu0 0
  %953 = vmatprep.subr.bf16.mxu0 0
  %954 = vmatpush1.bf16.msra.mxu0 0
  %955 = vmatprep.subr.bf16.mxu0 0
  %956 = vmatpush1.bf16.msra.mxu0 0
  %957 = vmatprep.subr.bf16.mxu0 0
  %958 = vmatpush1.bf16.msra.mxu0 0
  %959 = vmatprep.mubr.bf16.mxu0 0
  %960 = vmatmul.mubr.bf16.gmra.mrb[0].mxu0 %v855
  %v961 = vpop.f32.mrb[0].mxu0
  %v962 = vadd.f32 0.0, %v961
  %v963 = vpop.f32.mrb[0].mxu0
  %v964 = vpop.f32.mrb[0].mxu0
  %v965 = vadd.f32 0.0, %v964
  %v966 = vpop.f32.mrb[0].mxu0
  %967 = vmatprep.mubr.bf16.mxu0 0
  %968 = vmatmul.mubr.bf16.gmra.mrb[0].mxu0 %v856
  %v969 = vpop.f32.mrb[0].mxu0
  %v970 = vadd.f32 0.0, %v969
  %v971 = vpop.f32.mrb[0].mxu0
  %v972 = vpop.f32.mrb[0].mxu0
  %v973 = vadd.f32 0.0, %v972
  %v974 = vpop.f32.mrb[0].mxu0
  %975 = vmatprep.mubr.bf16.mxu0 0
  %976 = vmatmul.mubr.bf16.gmra.mrb[0].mxu0 %v857
  %v977 = vpop.f32.mrb[0].mxu0
  %v978 = vadd.f32 0.0, %v977
  %v979 = vpop.f32.mrb[0].mxu0
  %v980 = vpop.f32.mrb[0].mxu0
  %v981 = vadd.f32 0.0, %v980
  %v982 = vpop.f32.mrb[0].mxu0
  %983 = vmatprep.mubr.bf16.mxu0 0
  %984 = vmatmul.mubr.bf16.gmra.mrb[0].mxu0 %v858
  %v985 = vpop.f32.mrb[0].mxu0
  %v986 = vadd.f32 0.0, %v985
  %v987 = vpop.f32.mrb[0].mxu0
  %v988 = vpop.f32.mrb[0].mxu0
  %v989 = vadd.f32 0.0, %v988
  %v990 = vpop.f32.mrb[0].mxu0
  %991 = vmatprep.mubr.bf16.mxu0 0
  %992 = vmatmul.mubr.bf16.gmra.mrb[0].mxu0 %v859
  %v993 = vpop.f32.mrb[0].mxu0
  %v994 = vadd.f32 0.0, %v993
  %v995 = vpop.f32.mrb[0].mxu0
  %v996 = vpop.f32.mrb[0].mxu0
  %v997 = vadd.f32 0.0, %v996
  %v998 = vpop.f32.mrb[0].mxu0
  %999 = vmatprep.mubr.bf16.mxu0 0
  %1000 = vmatmul.mubr.bf16.gmra.mrb[0].mxu0 %v860
  %v1001 = vpop.f32.mrb[0].mxu0
  %v1002 = vadd.f32 0.0, %v1001
  %v1003 = vpop.f32.mrb[0].mxu0
  %v1004 = vpop.f32.mrb[0].mxu0
  %v1005 = vadd.f32 0.0, %v1004
  %v1006 = vpop.f32.mrb[0].mxu0
  %1007 = vmatprep.mubr.bf16.mxu0 0
  %1008 = vmatmul.mubr.bf16.gmra.mrb[0].mxu0 %v861
  %v1009 = vpop.f32.mrb[0].mxu0
  %v1010 = vadd.f32 0.0, %v1009
  %v1011 = vpop.f32.mrb[0].mxu0
  %v1012 = vpop.f32.mrb[0].mxu0
  %v1013 = vadd.f32 0.0, %v1012
  %v1014 = vpop.f32.mrb[0].mxu0
  %1015 = vmatprep.mubr.bf16.mxu0 0
  %1016 = vmatmul.mubr.bf16.gmra.mrb[0].mxu0 %v862
  %v1017 = vpop.f32.mrb[0].mxu0
  %v1018 = vadd.f32 0.0, %v1017
  %v1019 = vpop.f32.mrb[0].mxu0
  %v1020 = vpop.f32.mrb[0].mxu0
  %v1021 = vadd.f32 0.0, %v1020
  %v1022 = vpop.f32.mrb[0].mxu0
  %1023 = vdwg.mxu0
  %v1024 = vmul.f32 %v725, %v412
  %v1025 = vmul.f32 %v726, %v415
  %v1026 = vmul.f32 %v727, %v420
  %v1027 = vmul.f32 %v728, %v423
  %v1028 = vmul.f32 %v729, %v428
  %v1029 = vmul.f32 %v730, %v431
  %v1030 = vmul.f32 %v731, %v436
  %v1031 = vmul.f32 %v732, %v439
  %v1032 = vmul.f32 %v733, %v444
  %v1033 = vmul.f32 %v734, %v447
  %v1034 = vmul.f32 %v735, %v452
  %v1035 = vmul.f32 %v736, %v455
  %v1036 = vmul.f32 %v737, %v460
  %v1037 = vmul.f32 %v738, %v463
  %v1038 = vmul.f32 %v739, %v468
  %v1039 = vmul.f32 %v740, %v471
  %v1040 = vadd.f32 %v1024, %v962
  %v1041 = vadd.f32 %v1025, %v965
  %v1042 = vadd.f32 %v1026, %v970
  %v1043 = vadd.f32 %v1027, %v973
  %v1044 = vadd.f32 %v1028, %v978
  %v1045 = vadd.f32 %v1029, %v981
  %v1046 = vadd.f32 %v1030, %v986
  %v1047 = vadd.f32 %v1031, %v989
  %v1048 = vadd.f32 %v1032, %v994
  %v1049 = vadd.f32 %v1033, %v997
  %v1050 = vadd.f32 %v1034, %v1002
  %v1051 = vadd.f32 %v1035, %v1005
  %v1052 = vadd.f32 %v1036, %v1010
  %v1053 = vadd.f32 %v1037, %v1013
  %v1054 = vadd.f32 %v1038, %v1018
  %v1055 = vadd.f32 %v1039, %v1021
  %v1056 = vpack.c.bf16 %v1041, %v1040
  %v1057 = vpack.c.bf16 %v1043, %v1042
  %v1058 = vpack.c.bf16 %v1045, %v1044
  %v1059 = vpack.c.bf16 %v1047, %v1046
  %v1060 = vpack.c.bf16 %v1049, %v1048
  %v1061 = vpack.c.bf16 %v1051, %v1050
  %v1062 = vpack.c.bf16 %v1053, %v1052
  %v1063 = vpack.c.bf16 %v1055, %v1054
  %v1072 = vunpack.c.l.b16 %v1056
  %v1073 = vunpack.c.h.b16 %v1056
  %v1074 = vunpack.c.l.b16 %v1057
  %v1075 = vunpack.c.h.b16 %v1057
  %v1076 = vunpack.c.l.b16 %v1058
  %v1077 = vunpack.c.h.b16 %v1058
  %v1078 = vunpack.c.l.b16 %v1059
  %v1079 = vunpack.c.h.b16 %v1059
  %v1080 = vunpack.c.l.b16 %v1060
  %v1081 = vunpack.c.h.b16 %v1060
  %v1082 = vunpack.c.l.b16 %v1061
  %v1083 = vunpack.c.h.b16 %v1061
  %v1084 = vunpack.c.l.b16 %v1062
  %v1085 = vunpack.c.h.b16 %v1062
  %v1086 = vunpack.c.l.b16 %v1063
  %v1087 = vunpack.c.h.b16 %v1063
  %v1088 = vpack.c.b16 %v1072, %v1072
  %v1089 = vpack.c.b16 %v1073, %v1073
  %v1090 = vpack.c.b16 %v1074, %v1074
  %v1091 = vpack.c.b16 %v1075, %v1075
  %v1092 = vpack.c.b16 %v1076, %v1076
  %v1093 = vpack.c.b16 %v1077, %v1077
  %v1094 = vpack.c.b16 %v1078, %v1078
  %v1095 = vpack.c.b16 %v1079, %v1079
  %v1096 = vpack.c.b16 %v1080, %v1080
  %v1097 = vpack.c.b16 %v1081, %v1081
  %v1098 = vpack.c.b16 %v1082, %v1082
  %v1099 = vpack.c.b16 %v1083, %v1083
  %v1100 = vpack.c.b16 %v1084, %v1084
  %v1101 = vpack.c.b16 %v1085, %v1085
  %v1102 = vpack.c.b16 %v1086, %v1086
  %v1103 = vpack.c.b16 %v1087, %v1087
  %1120 = vst [vmem:[%s7] sm:$0xf] %v1088
  %1121 = vst [vmem:[%s7 + $0x4] sm:$0xf] %v1089
  %1122 = vst [vmem:[%s7 + $0x8] sm:$0xf] %v1090
  %1123 = vst [vmem:[%s7 + $0xc] sm:$0xf] %v1091
  %1124 = vst [vmem:[%s7 + $0x10] sm:$0xf] %v1092
  %1125 = vst [vmem:[%s7 + $0x14] sm:$0xf] %v1093
  %1126 = vst [vmem:[%s7 + $0x18] sm:$0xf] %v1094
  %1127 = vst [vmem:[%s7 + $0x1c] sm:$0xf] %v1095
  %1128 = vst [vmem:[%s7 + $0x20] sm:$0xf] %v1096
  %1129 = vst [vmem:[%s7 + $0x24] sm:$0xf] %v1097
  %1130 = vst [vmem:[%s7 + $0x28] sm:$0xf] %v1098
  %1131 = vst [vmem:[%s7 + $0x2c] sm:$0xf] %v1099
  %1132 = vst [vmem:[%s7 + $0x30] sm:$0xf] %v1100
  %1133 = vst [vmem:[%s7 + $0x34] sm:$0xf] %v1101
  %1134 = vst [vmem:[%s7 + $0x38] sm:$0xf] %v1102
  %1135 = vst [vmem:[%s7 + $0x3c] sm:$0xf] %v1103
  // Predicated region
  $region30: #{_rel_dists_jit.1} parent=0 // pred_check
    _
  $region31: #{_rel_dists_jit.1} parent=0 // pred_check_branch
    %1137 = sbr.rel (0) target = $region33
  $region32: #{_rel_dists_jit.1} parent=0 // pred_region
    _
  $region33: #{_rel_dists_jit.1} parent=0 // pred_fallthru
    _
  // Predicated region
  $region34: #{_rel_dists_jit.1} parent=0 // pred_check
    _
  $region35: #{_rel_dists_jit.1} parent=0 // pred_check_branch
    %1139 = sbr.rel (0) target = $region37
  $region36: #{_rel_dists_jit.1} parent=0 // pred_region
    _
  $region37: #{_rel_dists_jit.1} parent=0 // pred_fallthru
    _

</llo_original>
